<compile_context>
chip_gen: v5e
topology: v5e:2x2
jax: 0.10.0
libtpu: 0.0.40
codegen_flags: <defaults>
</compile_context>

<pallas_src>
import jax
import jax.numpy as jnp
from jax.experimental import pallas as pl
from jax.experimental.pallas import tpu as pltpu


# ----------------------------------------------------------------------------
# Kernel body
# ----------------------------------------------------------------------------
def _pooler_kernel(x_ref, w_ref, b_ref, o_ref):
    # x_ref: (B, H_in)    CLS-token activations (grid-constant)
    # w_ref: (H_in, TN)   weight column block, (in, out) layout -> no transpose
    # b_ref: (1, TN)      bias slice
    # o_ref: (B, TN)      output tile
    x = x_ref[...]
    w = w_ref[...]

    # fp8 / int8 storage: HBM-byte savings are already banked; upcast the tile
    # in VMEM (free, MXU is massively oversubscribed at small B) rather than
    # downcasting activations and losing precision.
    if w.dtype.itemsize < 2:
        w = w.astype(jnp.bfloat16)

    # Feed the MXU in the promoted common dtype, accumulate in f32.
    mxu_dtype = jnp.promote_types(x.dtype, w.dtype)
    y = jnp.dot(x.astype(mxu_dtype), w.astype(mxu_dtype),
                preferred_element_type=jnp.float32)

    # f32 epilogue (safe on v5e: no bf16 VPU/EUP there).
    y = y + b_ref[...].astype(jnp.float32)
    o_ref[...] = jnp.tanh(y).astype(o_ref.dtype)


# ----------------------------------------------------------------------------
# Tile / hardware heuristics
# ----------------------------------------------------------------------------
def _device_kind() -> str:
    try:
        return jax.devices()[0].device_kind.lower()
    except Exception:
        return ""


def _num_tensorcores_per_chip() -> int:
    kind = _device_kind()
    # v7x exposes 2 TensorCores per chip; v5e/v6e have 1.
    return 2 if ("v7" in kind or "7x" in kind) else 1


def _vmem_budget_bytes() -> int:
    kind = _device_kind()
    if "v5" in kind:
        return 12 * 1024 * 1024   # v5e default scoped VMEM is 16 MiB -> stay under
    return 24 * 1024 * 1024       # v6e (32 MiB scoped default) / v7x (64 MiB physical)


def _pick_tile_n(h_out: int, h_in: int, b: int,
                 w_itemsize: int, x_itemsize: int,
                 *, num_cores: int, vmem_budget: int) -> int:
    """Largest lane-dense output-column tile that fits the VMEM budget,
    with a multi-core-friendly split on dual-TC chips."""
    if h_out <= 128:
        return h_out

    def footprint(tn: int) -> int:
        w_buf = 2 * tn * h_in * w_itemsize       # double-buffered weight stream
        x_buf = 2 * b * h_in * x_itemsize        # grid-constant CLS slab (pipelined)
        o_buf = 2 * b * tn * x_itemsize          # output tile
        bias_buf = 2 * tn * 4
        return w_buf + x_buf + o_buf + bias_buf

    # Candidates: full H_out plus every multiple-of-128 divisor of H_out.
    cands = {h_out}
    tn = 128
    while tn < h_out:
        if h_out % tn == 0:
            cands.add(tn)
        tn += 128
    cands = sorted(cands, reverse=True)

    fitting = [c for c in cands if footprint(c) <= vmem_budget]
    if not fitting:
        return cands[-1]  # smallest divisor; explicit vmem_limit covers the rest

    if num_cores > 1:
        # Prefer an even split with >=2 tiles per core so each TC's weight DMA
        # stays pipelined against its (tiny) compute + writeback.
        for c in fitting:
            steps = h_out // c
            if steps % num_cores == 0 and steps >= 2 * num_cores:
                return c
        for c in fitting:
            if (h_out // c) % num_cores == 0:
                return c

    # Single-TC (v5e/v6e): biggest fitting tile -> fewest ~0.35 us grid steps.
    return fitting[0]


# ----------------------------------------------------------------------------
# Wrapper
# ----------------------------------------------------------------------------
def prepare_pooler_params(weight, bias):
    """ONE-TIME (parameter-load-time) relayout.

    weight: torch nn.Linear layout (out_features, in_features).
    Returns weight in (in, out) layout + bias as (1, out), so the per-call
    kernel never pays a transpose of the HxH weight.
    """
    return jnp.asarray(weight).T, jnp.asarray(bias).reshape(1, -1)


def bert_pooler(hidden_states: jax.Array, w_in_out: jax.Array, bias_2d: jax.Array) -> jax.Array:
    """hidden_states: (B, S, H); w_in_out: (H_in, H_out); bias_2d: (1, H_out)."""
    B, S, H = hidden_states.shape
    H_in, H_out = w_in_out.shape
    assert H_in == H, "weight in-features must match hidden size"
    assert bias_2d.shape == (1, H_out)

    # CLS-token slice in the wrapper: a cheap strided B*H copy, avoids an 8x
    # over-fetched, double-buffered seq slab inside the kernel.
    x0 = hidden_states[:, 0, :]                      # (B, H_in)

    w_itemsize = jnp.dtype(w_in_out.dtype).itemsize
    x_itemsize = jnp.dtype(hidden_states.dtype).itemsize
    b_itemsize = jnp.dtype(bias_2d.dtype).itemsize

    tn = _pick_tile_n(
        H_out, H_in, B, w_itemsize, x_itemsize,
        num_cores=_num_tensorcores_per_chip(),
        vmem_budget=_vmem_budget_bytes(),
    )
    grid = (H_out // tn,)

    cost = pl.CostEstimate(
        flops=2 * B * H_out * H_in,
        transcendentals=B * H_out,
        bytes_accessed=(H_out * H_in * w_itemsize      # weight stream
                        + B * H_in * x_itemsize        # CLS activations
                        + B * H_out * x_itemsize       # output
                        + H_out * b_itemsize),         # bias
    )

    return pl.pallas_call(
        _pooler_kernel,
        out_shape=jax.ShapeDtypeStruct((B, H_out), hidden_states.dtype),
        grid_spec=pltpu.PrefetchScalarGridSpec(
            num_scalar_prefetch=0,
            grid=grid,
            in_specs=[
                # Grid-constant CLS activations.
                pl.BlockSpec((B, H_in), lambda j: (0, 0)),
                # Weight column block, (in, out) layout — contraction dim on sublanes.
                pl.BlockSpec((H_in, tn), lambda j: (0, j)),
                # Bias slice.
                pl.BlockSpec((1, tn), lambda j: (0, j)),
            ],
            out_specs=pl.BlockSpec((B, tn), lambda j: (0, j)),
        ),
        compiler_params=pltpu.CompilerParams(
            # Column tiles are independent -> shard across v7x's 2 TCs;
            # harmless on single-TC v5e/v6e.
            dimension_semantics=("parallel",),
            # Safe on all generations (v5e/v6e physical 128 MiB, v7x 64 MiB);
            # keeps large-H configs from tripping v5e's 16 MiB scoped default.
            vmem_limit_bytes=32 * 1024 * 1024,
        ),
        cost_estimate=cost,
    )(x0, w_in_out, bias_2d)


# ----------------------------------------------------------------------------
# Reference + test
# ----------------------------------------------------------------------------
def _reference(hidden_states, weight, bias):
    first = hidden_states[:, 0, :]
    return jnp.tanh(first @ weight.T + bias)


if __name__ == "__main__":
    key = jax.random.PRNGKey(0)
    k1, k2, k3 = jax.random.split(key, 3)

    B, S, H = 2, 8, 32
    hidden_states = jax.random.normal(k1, (B, S, H), dtype=jnp.float32)
    # Deterministic synthetic params (nn.Linear(H, H): weight (out, in), bias (out,))
    weight = jax.random.normal(k2, (H, H), dtype=jnp.float32) * 0.02
    bias = jax.random.normal(k3, (H,), dtype=jnp.float32) * 0.02

    # One-time parameter relayout (parameter-load time, not per call).
    w_in_out, bias_2d = prepare_pooler_params(weight, bias)

    out = bert_pooler(hidden_states, w_in_out, bias_2d)
    out = jax.block_until_ready(out)

    ref = _reference(hidden_states, weight, bias)
    assert out.shape == (B, H)
    assert jnp.allclose(out, ref, atol=1e-5, rtol=1e-5), "mismatch vs reference"

    print("KERNEL_OK")
</pallas_src>

<mosaic_0001>
module attributes {stable_mosaic.version = 11 : i64} {
  func.func @_pooler_kernel(%arg0: i32, %arg1: memref<2x32xf32, #tpu.memory_space<vmem>>, %arg2: memref<32x32xf32, #tpu.memory_space<vmem>>, %arg3: memref<1x32xf32, #tpu.memory_space<vmem>>, %arg4: memref<2x32xf32, #tpu.memory_space<vmem>>) attributes {dimension_semantics = [#tpu.dimension_semantics<parallel>], iteration_bounds = array<i64: 1>, scalar_prefetch = 0 : i64, scratch_operands = 0 : i64, tpu.core_type = #tpu.core_type<tc>, window_params = [{pipeline_mode = #tpu.pipeline_mode<synchronous>, transform_indices = @transform_0, window_bounds = array<i64: 2, 32>}, {transform_indices = @transform_1, window_bounds = array<i64: 32, 32>}, {transform_indices = @transform_2, window_bounds = array<i64: 1, 32>}, {transform_indices = @transform_3, window_bounds = array<i64: 2, 32>}]} {
    %c0 = arith.constant 0 : index
    %c0_0 = arith.constant 0 : index
    %0 = vector.load %arg1[%c0, %c0_0] : memref<2x32xf32, #tpu.memory_space<vmem>>, vector<2x32xf32>
    %c0_1 = arith.constant 0 : index
    %c0_2 = arith.constant 0 : index
    %1 = vector.load %arg2[%c0_1, %c0_2] : memref<32x32xf32, #tpu.memory_space<vmem>>, vector<32x32xf32>
    %cst = arith.constant dense<0.000000e+00> : vector<2x32xf32>
    %2 = tpu.matmul %0, %1, %cst {dimension_numbers = #tpu.dot_dimension_numbers<[1], [0], [0], [1], [0, 0, 1, 1], [], []>} : vector<2x32xf32>, vector<32x32xf32>, vector<2x32xf32> -> vector<2x32xf32>
    %c0_3 = arith.constant 0 : index
    %c0_4 = arith.constant 0 : index
    %3 = vector.load %arg3[%c0_3, %c0_4] : memref<1x32xf32, #tpu.memory_space<vmem>>, vector<1x32xf32>
    %4 = vector.broadcast %3 : vector<1x32xf32> to vector<2x32xf32>
    %5 = arith.addf %2, %4 : vector<2x32xf32>
    %6 = math.tanh %5 : vector<2x32xf32>
    %c0_5 = arith.constant 0 : index
    %c0_6 = arith.constant 0 : index
    %7 = vector.load %arg4[%c0_5, %c0_6] : memref<2x32xf32, #tpu.memory_space<vmem>>, vector<2x32xf32>
    tpu.vector_store %arg4[%c0_5, %c0_6], %6 {strides = array<i32>} : memref<2x32xf32, #tpu.memory_space<vmem>>, vector<2x32xf32>,
    return
  }
  func.func @transform_0(%arg0: i32) -> (i32, i32) {
    %c0_i32 = arith.constant 0 : i32
    %c0_i32_0 = arith.constant 0 : i32
    %c0_i32_1 = arith.constant 0 : i32
    return %c0_i32, %c0_i32_0 : i32, i32
  }
  func.func @transform_1(%arg0: i32) -> (i32, i32) {
    %c0_i32 = arith.constant 0 : i32
    %c0_i32_0 = arith.constant 0 : i32
    return %c0_i32, %arg0 : i32, i32
  }
  func.func @transform_2(%arg0: i32) -> (i32, i32) {
    %c0_i32 = arith.constant 0 : i32
    %c0_i32_0 = arith.constant 0 : i32
    return %c0_i32, %arg0 : i32, i32
  }
  func.func @transform_3(%arg0: i32) -> (i32, i32) {
    %c0_i32 = arith.constant 0 : i32
    %c0_i32_0 = arith.constant 0 : i32
    return %c0_i32, %arg0 : i32, i32
  }
}

</mosaic_0001>

<llo_original>
// kernel: tpu_custom_call.1
$region0: #{tpu_custom_call.1}
  #allocation0 [shape = 'u32[]', space=smem, size = 0x4, offset = 0x4, fixed_abs, tag = 'smem constant byte address 0x4 - core index']
  #allocation1 [shape = 'u32[72,128]{1,0:T(1,128)}', space=vmem, size = 0x9000, scoped, tag = 'internal scratch']
  %s0 = inlined_call_operand.hbm [shape: f32[2,32], index: 0, kind: input, shape index: {}]
  %s1 = inlined_call_operand.hbm [shape: f32[32,32], index: 1, kind: input, shape index: {}]
  %s2 = inlined_call_operand.vmem [shape: f32[1,32], index: 2, kind: input, shape index: {}]
  %s3 = inlined_call_operand.hbm [shape: f32[2,32], index: 3, kind: output, shape index: {}]
  %s4 = sld [smem:[#allocation0]]
  $region30: #{tpu_custom_call.1} parent=0
    _
  %s6 = ssub.s32 1, %s4
  %s7 = scalar_select 0, %s6, %s4
  $region1: #{tpu_custom_call.1} parent=0
    #allocation2 [shape = 'u8[1024]{0}', space=vmem, size = 0x400, scoped, tag = 'input window, operand 0, single buffered']
    #allocation3 [shape = 's32[1]{0}', space=sflag, size = 0x4, scoped, tag = 'scoped memory for tpu_custom_call.1']
    #allocation4 [shape = 's32[1]{0}', space=sflag, size = 0x4, scoped, tag = 'scoped memory for tpu_custom_call.1']
    #allocation5 [shape = 'u8[16384]{0}', space=vmem, size = 0x4000, scoped, tag = 'input window, operand 1, single buffered']
    #allocation6 [shape = 's32[1]{0}', space=sflag, size = 0x4, scoped, tag = 'scoped memory for tpu_custom_call.1']
    #allocation7 [shape = 'u8[1024]{0}', space=vmem, size = 0x400, scoped, tag = 'output window, operand 0, single buffered']
    %8 = vsyncpa [#allocation3], 0
    %9 = vsyncpa [#allocation6], 0
    %10 = vsyncpa [#allocation4], 0
    // Predicated region
    $region2: #{tpu_custom_call.1} parent=1 // pred_check
      _
    $region3: #{tpu_custom_call.1} parent=1 // pred_check_branch
      %12 = sbr.rel (0) target = $region5
    $region4: #{tpu_custom_call.1} parent=1 // pred_region
      %14 = vsyncadd [#allocation3], 0
      %s16 = sshll.u32 %s0, 4
      %s17 = int_to_ptr.hbm [resolvable:$true] %s16
      %s18 = sshll.u32 [#allocation2], 4
      %s19 = int_to_ptr.vmem [resolvable:$true] %s18
      %21 = dma.hbm_to_vmem [thread:$0]  %s17, 32, %s19, [#allocation3]
    $region5: #{tpu_custom_call.1} parent=1 // pred_fallthru
      _
    // Predicated region
    $region6: #{tpu_custom_call.1} parent=1 // pred_check
      _
    $region7: #{tpu_custom_call.1} parent=1 // pred_check_branch
      %23 = sbr.rel (0) target = $region9
    $region8: #{tpu_custom_call.1} parent=1 // pred_region
      %25 = vsyncadd [#allocation6], 0
      %s26 = sshll.u32 %s1, 4
      %s27 = int_to_ptr.hbm [resolvable:$true] %s26
      %s28 = sshll.u32 [#allocation5], 4
      %s29 = int_to_ptr.vmem [resolvable:$true] %s28
      %34 = dma.hbm_to_vmem [thread:$0]  %s27, 512, %s29, [#allocation6], 128, 128, 8
    $region9: #{tpu_custom_call.1} parent=1 // pred_fallthru
      _
    // Predicated region
    $region10: #{tpu_custom_call.1} parent=1 // pred_check
      _
    $region11: #{tpu_custom_call.1} parent=1 // pred_check_branch
      %36 = sbr.rel (0) target = $region13
    $region12: #{tpu_custom_call.1} parent=1 // pred_region
      _
    $region13: #{tpu_custom_call.1} parent=1 // pred_fallthru
      _
    // Predicated region
    $region14: #{tpu_custom_call.1} parent=1 // pred_check
      _
    $region15: #{tpu_custom_call.1} parent=1 // pred_check_branch
      %38 = sbr.rel (0) target = $region17
    $region16: #{tpu_custom_call.1} parent=1 // pred_region
      %40 = dma.done [#allocation3], 32
    $region17: #{tpu_custom_call.1} parent=1 // pred_fallthru
      _
    // Predicated region
    $region18: #{tpu_custom_call.1} parent=1 // pred_check
      _
    $region19: #{tpu_custom_call.1} parent=1 // pred_check_branch
      %42 = sbr.rel (0) target = $region21
    $region20: #{tpu_custom_call.1} parent=1 // pred_region
      %44 = dma.done [#allocation6], 512
    $region21: #{tpu_custom_call.1} parent=1 // pred_fallthru
      _
    %v45 = vld [vmem:[#allocation2] sm:$0x3]
    %v46 = vld [vmem:[#allocation5] sm:$0xff]
    %v47 = vld [vmem:[#allocation5 + $0x8] sm:$0xff]
    %v48 = vld [vmem:[#allocation5 + $0x10] sm:$0xff]
    %v49 = vld [vmem:[#allocation5 + $0x18] sm:$0xff]
    %v50 = vld [vmem:[%s2] sm:$0x1]
    %v52 = vperm.slane %v50, 0
    %vm54 = vcmask 261120
    %v56 = vsel %vm54, %v45, 0
    %58 = vmatpush.msra.mxu0 0.0
    %59 = vmatpush.msra.mxu0 0.0
    %60 = vmatpush.msra.mxu0 0.0
    %61 = vmatpush.msra.mxu0 0.0
    %62 = vmatpush.msra.mxu0 0.0
    %63 = vmatpush.msra.mxu0 0.0
    %64 = vmatpush.msra.mxu0 0.0
    %65 = vmatpush.msra.mxu0 0.0
    %66 = vmatpush.msra.mxu0 0.0
    %67 = vmatpush.msra.mxu0 0.0
    %68 = vmatpush.msra.mxu0 0.0
    %69 = vmatpush.msra.mxu0 0.0
    %70 = vmatpush.msra.mxu0 %v49
    %71 = vmatpush.msra.mxu0 %v48
    %72 = vmatpush.msra.mxu0 %v47
    %73 = vmatpush.msra.mxu0 %v46
    %74 = vmatmul.f32.gmra.mxu0 %v56
    %v75 = vpop.f32.mrf.mxu0
    %v76 = vadd.f32 %v52, %v75
    %77 = vdwg.mxu0
    %v78 = vtanh.pop %v76
    %vm79 = vcmask 254976
    %80 = vst.msk [vmem:[#allocation7] sm:$0x3] %vm79, %v78
    // Predicated region
    $region22: #{tpu_custom_call.1} parent=1 // pred_check
      _
    $region23: #{tpu_custom_call.1} parent=1 // pred_check_branch
      %82 = sbr.rel (0) target = $region25
    $region24: #{tpu_custom_call.1} parent=1 // pred_region
      %84 = vsyncadd [#allocation4], 0
      %s86 = sshll.u32 [#allocation7], 4
      %s87 = int_to_ptr.vmem [resolvable:$true] %s86
      %s88 = sshll.u32 %s3, 4
      %s89 = int_to_ptr.hbm [resolvable:$true] %s88
      %91 = dma.vmem_to_hbm [thread:$0]  %s87, 32, %s89, [#allocation4]
    $region25: #{tpu_custom_call.1} parent=1 // pred_fallthru
      _
    // Predicated region
    $region26: #{tpu_custom_call.1} parent=1 // pred_check
      _
    $region27: #{tpu_custom_call.1} parent=1 // pred_check_branch
      %93 = sbr.rel (0) target = $region29
    $region28: #{tpu_custom_call.1} parent=1 // pred_region
      %95 = dma.done [#allocation4], 32
    $region29: #{tpu_custom_call.1} parent=1 // pred_fallthru
      _
    %96 = vsyncpa [#allocation3], 1
    %97 = vsyncpa [#allocation6], 1
    %98 = vsyncpa [#allocation4], 1

</llo_original>
